<compile_context>
chip_gen: v7x
topology: tpu7x:2x2x1
jax: 0.10.0
libtpu: 0.0.40
codegen_flags: <defaults>
</compile_context>

<pallas_src>
import functools

import jax
import jax.numpy as jnp
from jax.experimental import pallas as pl
from jax.experimental.pallas import tpu as pltpu

_CLS_BITS = 12                        # gt class in the low 12 bits
_CLS_MASK = (1 << _CLS_BITS) - 1
_LBL_SHIFT = _CLS_BITS                # matched_label (0/1) in bit 12
_IDX_SHIFT = _CLS_BITS + 1            # matched gt index in bits 13..30


def _round_up(x, m):
    return ((x + m - 1) // m) * m


def _roi_match_kernel(gt_ref, prop_ref, cls_ref, out_ref, *iou_refs,
                      num_classes, iou_threshold):
    """One (image, N-tile) grid step.

    gt_ref   : [M, 4]   f32  (gt index on sublanes, coord on lanes)
    prop_ref : [4, TN]  f32  (coord on sublanes, proposal on lanes)
    cls_ref  : [M, 1]   i32
    out_ref  : [1, TN]  i32  packed: (matched_idx<<13)|(matched_label<<12)|cls
    iou_refs : optionally ([M, TN] f32,) exact-ish IoU matrix
    """
    M = gt_ref.shape[0]
    N = prop_ref.shape[1]

    gx1 = gt_ref[:, 0:1]
    gy1 = gt_ref[:, 1:2]
    gx2 = gt_ref[:, 2:3]
    gy2 = gt_ref[:, 3:4]

    px1 = prop_ref[0:1, :]
    py1 = prop_ref[1:2, :]
    px2 = prop_ref[2:3, :]
    py2 = prop_ref[3:4, :]

    gt_area = (gx2 - gx1) * (gy2 - gy1)       # [M, 1]
    pr_area = (px2 - px1) * (py2 - py1)       # [1, N]

    iw = jnp.maximum(jnp.minimum(gx2, px2) - jnp.maximum(gx1, px1), 0.0)
    ih = jnp.maximum(jnp.minimum(gy2, py2) - jnp.maximum(gy1, py1), 0.0)
    inter = iw * ih                           # [M, N]
    union = gt_area + pr_area - inter         # [M, N]

    # Reciprocal on the EUP slot (approx) + one Newton step -> ~f32 accuracy,
    # avoiding the multi-op VALU divide sequence.
    u = jnp.maximum(union, 1e-12)
    r = pl.reciprocal(u, approx=True)
    r = r * (2.0 - u * r)
    iou = inter * r                           # [M, N]; exactly 0 where inter==0

    if iou_refs:
        iou_refs[0][...] = iou

    # Matcher argmax fused with the gt-class gather: pack
    # key = (gt_idx << 12) | gt_class and take the min over rows achieving the
    # column max (first-max tie break, matching torch argmax). Zero-area padded
    # gt rows give IoU 0 and never beat real row 0 on an index tie.
    max_iou = jnp.max(iou, axis=0, keepdims=True)                    # [1, N]
    is_max = iou == max_iou                                          # [M, N]
    gt_iota = jax.lax.broadcasted_iota(jnp.int32, (M, N), 0)
    key = (gt_iota << _CLS_BITS) + cls_ref[...]                      # [M, N]
    big = M << _CLS_BITS
    packed = jnp.min(jnp.where(is_max, key, big), axis=0, keepdims=True)
    matched_idxs = packed >> _CLS_BITS                               # [1, N]
    gathered_cls = packed & _CLS_MASK                                # [1, N]

    # Division-free exact threshold: max IoU >= thr  <=>  any inter >= thr*union
    fg = (inter > 0.0) & (inter >= iou_threshold * union)            # [M, N]
    matched_labels = jnp.max(fg.astype(jnp.int32), axis=0, keepdims=True)

    pcls = jnp.where(matched_labels == 0, num_classes, gathered_cls)  # [1, N]

    # Single lane-dense packed store (one int32 per proposal).
    out_ref[...] = ((matched_idxs << _IDX_SHIFT)
                    | (matched_labels << _LBL_SHIFT)
                    | pcls)


def roi_match(gt_boxes, prop_boxes_t, gt_classes, *, num_classes,
              iou_threshold=0.5, tile_n=1024, return_iou=False):
    """Batched match/label kernel.

    gt_boxes     : [B, Mp, 4] f32   (Mp % 8 == 0)
    prop_boxes_t : [B, 4, Np] f32   (Np % tile_n == 0, tile_n % 128 == 0)
    gt_classes   : [B, Mp, 1] i32
    Returns packed [B, 1, Np] i32 ((idx<<13)|(label<<12)|class) and optionally
    iou [B, Mp, Np] f32.
    """
    B, M, _ = gt_boxes.shape
    N = prop_boxes_t.shape[2]
    assert M % 8 == 0 and tile_n % 128 == 0 and N % tile_n == 0
    assert num_classes + 1 <= (1 << _CLS_BITS)
    assert M < (1 << (31 - _IDX_SHIFT)), "too many gt boxes for packing"
    grid = (B, N // tile_n)

    kernel = functools.partial(_roi_match_kernel, num_classes=num_classes,
                               iou_threshold=iou_threshold)

    out_shape = [jax.ShapeDtypeStruct((B, 1, N), jnp.int32)]
    out_specs = [pl.BlockSpec((None, 1, tile_n), lambda b, n: (b, 0, n))]
    if return_iou:
        out_shape.append(jax.ShapeDtypeStruct((B, M, N), jnp.float32))
        out_specs.append(
            pl.BlockSpec((None, M, tile_n), lambda b, n: (b, 0, n)))

    return pl.pallas_call(
        kernel,
        out_shape=tuple(out_shape),
        grid=grid,
        in_specs=[
            pl.BlockSpec((None, M, 4), lambda b, n: (b, 0, 0)),
            pl.BlockSpec((None, 4, tile_n), lambda b, n: (b, 0, n)),
            pl.BlockSpec((None, M, 1), lambda b, n: (b, 0, 0)),
        ],
        out_specs=tuple(out_specs),
        compiler_params=pltpu.CompilerParams(
            dimension_semantics=("parallel", "parallel")),
    )(gt_boxes, prop_boxes_t, gt_classes)


class ROIHeadsPallas:
    """JAX/Pallas port of the numeric core of DEFRCN's ROIHeads base class.

    Implements the deterministic per-image labeling math used by
    label_and_sample_proposals (pairwise IoU + Matcher + gt-class assignment)
    as a single batched Pallas kernel. `forward` is abstract in the PyTorch
    base class and is preserved as such.
    Only a single IoU threshold with IOU_LABELS=[0,1] and
    allow_low_quality_matches=False is supported (the ROIHeads default).
    """

    def __init__(self, num_classes=20, batch_size_per_image=128,
                 positive_fraction=0.25, iou_threshold=0.5, tile_n=1024):
        self.num_classes = num_classes
        self.batch_size_per_image = batch_size_per_image
        self.positive_sample_fraction = positive_fraction
        self.iou_threshold = iou_threshold
        self.tile_n = tile_n

    def label_proposals(self, gt_boxes, proposal_boxes, gt_classes,
                        return_iou=False):
        """gt_boxes [B,M,4], proposal_boxes [B,N,4], gt_classes [B,M].

        Returns (matched_idxs [B,N], matched_labels [B,N],
                 prop_gt_classes [B,N][, iou [B,M,N]]).
        NOTE: for background proposals matched_idxs is the first-max index
        (as in torch argmax); padded gt rows are never selected because real
        rows always win index ties.
        """
        B, M, _ = gt_boxes.shape
        N = proposal_boxes.shape[1]
        if M == 0:  # mirrors has_gt == False: everything is background
            z = jnp.zeros((B, N), jnp.int32)
            bg = jnp.full((B, N), self.num_classes, jnp.int32)
            if return_iou:
                return z, z, bg, jnp.zeros((B, 0, N), jnp.float32)
            return z, z, bg

        m_pad = _round_up(M, 8)
        n_pad128 = _round_up(N, 128)
        tile_n = min(self.tile_n, n_pad128)
        n_pad = _round_up(N, tile_n)

        # Batched staging: pad M (zero-area dummy gt -> IoU 0, never wins a
        # tie against real row 0), pad N, and fold the [B,N,4]->[B,4,N]
        # transpose into the same step.
        gt_b = jnp.zeros((B, m_pad, 4), jnp.float32)
        gt_b = gt_b.at[:, :M, :].set(gt_boxes.astype(jnp.float32))
        gc_b = jnp.zeros((B, m_pad, 1), jnp.int32)
        gc_b = gc_b.at[:, :M, 0].set(gt_classes.astype(jnp.int32))
        prop_t = jnp.zeros((B, 4, n_pad), jnp.float32)
        prop_t = prop_t.at[:, :, :N].set(
            jnp.transpose(proposal_boxes.astype(jnp.float32), (0, 2, 1)))

        outs = roi_match(gt_b, prop_t, gc_b, num_classes=self.num_classes,
                         iou_threshold=self.iou_threshold, tile_n=tile_n,
                         return_iou=return_iou)
        packed = outs[0][:, 0, :N]
        matched_idxs = packed >> _IDX_SHIFT
        matched_labels = (packed >> _LBL_SHIFT) & 1
        prop_gt_classes = packed & _CLS_MASK
        # TODO(synk): subsample_labels (random fg/bg subsampling to
        # batch_size_per_image with positive_sample_fraction) is stochastic
        # index selection and stays in plain JAX/host glue, not in the kernel.
        if return_iou:
            return (matched_idxs, matched_labels, prop_gt_classes,
                    outs[1][:, :M, :N])
        return matched_idxs, matched_labels, prop_gt_classes

    def forward(self, images, features, proposals, targets=None):
        raise NotImplementedError()


def _reference_single(gt_boxes, proposal_boxes, gt_classes, num_classes, thr):
    gx1, gy1, gx2, gy2 = [gt_boxes[:, i:i + 1] for i in range(4)]
    px1, py1, px2, py2 = [proposal_boxes[:, i][None, :] for i in range(4)]
    ga = (gx2 - gx1) * (gy2 - gy1)
    pa = (px2 - px1) * (py2 - py1)
    iw = jnp.maximum(jnp.minimum(gx2, px2) - jnp.maximum(gx1, px1), 0.0)
    ih = jnp.maximum(jnp.minimum(gy2, py2) - jnp.maximum(gy1, py1), 0.0)
    inter = iw * ih
    iou = jnp.where(inter > 0, inter / jnp.maximum(ga + pa - inter, 1e-12), 0.0)
    midx = jnp.argmax(iou, axis=0).astype(jnp.int32)
    mval = jnp.max(iou, axis=0)
    mlabel = (mval >= thr).astype(jnp.int32)
    pcls = jnp.where(mlabel == 0, num_classes,
                     gt_classes[midx]).astype(jnp.int32)
    return iou, midx, mlabel, pcls


if __name__ == "__main__":
    key = jax.random.PRNGKey(0)
    B, M, N = 2, 6, 100          # deliberately unaligned -> exercises padding
    num_classes = 20

    def make_boxes(k, b, n):
        xy = jax.random.uniform(k, (b, n, 2), minval=0.0, maxval=100.0)
        wh = jax.random.uniform(jax.random.fold_in(k, 1), (b, n, 2),
                                minval=4.0, maxval=40.0)
        return jnp.concatenate([xy, xy + wh], axis=-1).astype(jnp.float32)

    k1, k2, k3 = jax.random.split(key, 3)
    gt_boxes = make_boxes(k1, B, M)                       # [B, M, 4]
    proposal_boxes = make_boxes(k2, B, N)                 # [B, N, 4]
    gt_classes = jax.random.randint(k3, (B, M), 0, num_classes,
                                    dtype=jnp.int32)      # [B, M]

    heads = ROIHeadsPallas(num_classes=num_classes, iou_threshold=0.5)

    # path with the optional IoU matrix output
    midx, mlabel, pcls, iou = heads.label_proposals(
        gt_boxes, proposal_boxes, gt_classes, return_iou=True)
    # default fast path (no [M,N] IoU writeback)
    midx2, mlabel2, pcls2 = heads.label_proposals(
        gt_boxes, proposal_boxes, gt_classes)
    jax.block_until_ready((midx, mlabel, pcls, iou, midx2, mlabel2, pcls2))

    for b in range(B):
        r_iou, r_midx, r_mlabel, r_pcls = _reference_single(
            gt_boxes[b], proposal_boxes[b], gt_classes[b], num_classes, 0.5)
        assert jnp.allclose(iou[b], r_iou, atol=1e-5), "IoU mismatch"
        assert jnp.array_equal(midx[b], r_midx), "matched_idxs mismatch"
        assert jnp.array_equal(mlabel[b], r_mlabel), "matched_labels mismatch"
        assert jnp.array_equal(pcls[b], r_pcls), "gt_classes mismatch"
        assert jnp.array_equal(midx2[b], r_midx), "matched_idxs mismatch (fast)"
        assert jnp.array_equal(mlabel2[b], r_mlabel), "labels mismatch (fast)"
        assert jnp.array_equal(pcls2[b], r_pcls), "gt_classes mismatch (fast)"
    print("KERNEL_OK")
</pallas_src>

<mosaic_0001>
module attributes {stable_mosaic.version = 11 : i64} {
  func.func @_roi_match_kernel(%arg0: i32, %arg1: i32, %arg2: memref<1x8x4xf32, #tpu.memory_space<vmem>>, %arg3: memref<1x4x128xf32, #tpu.memory_space<vmem>>, %arg4: memref<1x8x1xi32, #tpu.memory_space<vmem>>, %arg5: memref<1x1x128xi32, #tpu.memory_space<vmem>>, %arg6: memref<1x8x128xf32, #tpu.memory_space<vmem>>) attributes {dimension_semantics = [#tpu.dimension_semantics<parallel>, #tpu.dimension_semantics<parallel>], iteration_bounds = array<i64: 2, 1>, scalar_prefetch = 0 : i64, scratch_operands = 0 : i64, tpu.core_type = #tpu.core_type<tc>, window_params = [{transform_indices = @transform_0, window_bounds = array<i64: 1, 8, 4>}, {transform_indices = @transform_1, window_bounds = array<i64: 1, 4, 128>}, {transform_indices = @transform_2, window_bounds = array<i64: 1, 8, 1>}, {transform_indices = @transform_3, window_bounds = array<i64: 1, 1, 128>}, {transform_indices = @transform_4, window_bounds = array<i64: 1, 8, 128>}]} {
    %c0 = arith.constant 0 : index
    %c0_0 = arith.constant 0 : index
    %c0_1 = arith.constant 0 : index
    %0 = vector.load %arg2[%c0, %c0_0, %c0_1] : memref<1x8x4xf32, #tpu.memory_space<vmem>>, vector<1x8x1xf32>
    %1 = vector.shape_cast %0 : vector<1x8x1xf32> to vector<8x1xf32>
    %c0_2 = arith.constant 0 : index
    %c0_3 = arith.constant 0 : index
    %c1 = arith.constant 1 : index
    %2 = vector.load %arg2[%c0_2, %c0_3, %c1] : memref<1x8x4xf32, #tpu.memory_space<vmem>>, vector<1x8x1xf32>
    %3 = vector.shape_cast %2 : vector<1x8x1xf32> to vector<8x1xf32>
    %c0_4 = arith.constant 0 : index
    %c0_5 = arith.constant 0 : index
    %c2 = arith.constant 2 : index
    %4 = vector.load %arg2[%c0_4, %c0_5, %c2] : memref<1x8x4xf32, #tpu.memory_space<vmem>>, vector<1x8x1xf32>
    %5 = vector.shape_cast %4 : vector<1x8x1xf32> to vector<8x1xf32>
    %c0_6 = arith.constant 0 : index
    %c0_7 = arith.constant 0 : index
    %c3 = arith.constant 3 : index
    %6 = vector.load %arg2[%c0_6, %c0_7, %c3] : memref<1x8x4xf32, #tpu.memory_space<vmem>>, vector<1x8x1xf32>
    %7 = vector.shape_cast %6 : vector<1x8x1xf32> to vector<8x1xf32>
    %c0_8 = arith.constant 0 : index
    %c0_9 = arith.constant 0 : index
    %c0_10 = arith.constant 0 : index
    %8 = vector.load %arg3[%c0_8, %c0_9, %c0_10] : memref<1x4x128xf32, #tpu.memory_space<vmem>>, vector<1x1x128xf32>
    %9 = vector.shape_cast %8 : vector<1x1x128xf32> to vector<1x128xf32>
    %c0_11 = arith.constant 0 : index
    %c1_12 = arith.constant 1 : index
    %c0_13 = arith.constant 0 : index
    %10 = vector.load %arg3[%c0_11, %c1_12, %c0_13] : memref<1x4x128xf32, #tpu.memory_space<vmem>>, vector<1x1x128xf32>
    %11 = vector.shape_cast %10 : vector<1x1x128xf32> to vector<1x128xf32>
    %c0_14 = arith.constant 0 : index
    %c2_15 = arith.constant 2 : index
    %c0_16 = arith.constant 0 : index
    %12 = vector.load %arg3[%c0_14, %c2_15, %c0_16] : memref<1x4x128xf32, #tpu.memory_space<vmem>>, vector<1x1x128xf32>
    %13 = vector.shape_cast %12 : vector<1x1x128xf32> to vector<1x128xf32>
    %c0_17 = arith.constant 0 : index
    %c3_18 = arith.constant 3 : index
    %c0_19 = arith.constant 0 : index
    %14 = vector.load %arg3[%c0_17, %c3_18, %c0_19] : memref<1x4x128xf32, #tpu.memory_space<vmem>>, vector<1x1x128xf32>
    %15 = vector.shape_cast %14 : vector<1x1x128xf32> to vector<1x128xf32>
    %16 = arith.subf %5, %1 : vector<8x1xf32>
    %17 = arith.subf %7, %3 : vector<8x1xf32>
    %18 = arith.mulf %16, %17 : vector<8x1xf32>
    %19 = arith.subf %13, %9 : vector<1x128xf32>
    %20 = arith.subf %15, %11 : vector<1x128xf32>
    %21 = arith.mulf %19, %20 : vector<1x128xf32>
    %22 = vector.broadcast %5 : vector<8x1xf32> to vector<8x128xf32>
    %23 = vector.broadcast %13 : vector<1x128xf32> to vector<8x128xf32>
    %24 = arith.minimumf %22, %23 : vector<8x128xf32>
    %25 = vector.broadcast %1 : vector<8x1xf32> to vector<8x128xf32>
    %26 = vector.broadcast %9 : vector<1x128xf32> to vector<8x128xf32>
    %27 = arith.maximumf %25, %26 : vector<8x128xf32>
    %28 = arith.subf %24, %27 : vector<8x128xf32>
    %cst = arith.constant 0.000000e+00 : f32
    %29 = vector.broadcast %cst : f32 to vector<8x128xf32>
    %30 = arith.maximumf %28, %29 : vector<8x128xf32>
    %31 = vector.broadcast %7 : vector<8x1xf32> to vector<8x128xf32>
    %32 = vector.broadcast %15 : vector<1x128xf32> to vector<8x128xf32>
    %33 = arith.minimumf %31, %32 : vector<8x128xf32>
    %34 = vector.broadcast %3 : vector<8x1xf32> to vector<8x128xf32>
    %35 = vector.broadcast %11 : vector<1x128xf32> to vector<8x128xf32>
    %36 = arith.maximumf %34, %35 : vector<8x128xf32>
    %37 = arith.subf %33, %36 : vector<8x128xf32>
    %cst_20 = arith.constant 0.000000e+00 : f32
    %38 = vector.broadcast %cst_20 : f32 to vector<8x128xf32>
    %39 = arith.maximumf %37, %38 : vector<8x128xf32>
    %40 = arith.mulf %30, %39 : vector<8x128xf32>
    %41 = vector.broadcast %18 : vector<8x1xf32> to vector<8x128xf32>
    %42 = vector.broadcast %21 : vector<1x128xf32> to vector<8x128xf32>
    %43 = arith.addf %41, %42 : vector<8x128xf32>
    %44 = arith.subf %43, %40 : vector<8x128xf32>
    %cst_21 = arith.constant 9.99999996E-13 : f32
    %45 = vector.broadcast %cst_21 : f32 to vector<8x128xf32>
    %46 = arith.maximumf %44, %45 : vector<8x128xf32>
    %47 = tpu.reciprocal %46 {approx = true} : vector<8x128xf32> -> vector<8x128xf32>
    %48 = arith.mulf %46, %47 : vector<8x128xf32>
    %cst_22 = arith.constant 2.000000e+00 : f32
    %49 = vector.broadcast %cst_22 : f32 to vector<8x128xf32>
    %50 = arith.subf %49, %48 : vector<8x128xf32>
    %51 = arith.mulf %47, %50 : vector<8x128xf32>
    %52 = arith.mulf %40, %51 : vector<8x128xf32>
    %c0_23 = arith.constant 0 : index
    %c0_24 = arith.constant 0 : index
    %c0_25 = arith.constant 0 : index
    %53 = vector.load %arg6[%c0_23, %c0_24, %c0_25] : memref<1x8x128xf32, #tpu.memory_space<vmem>>, vector<1x8x128xf32>
    %54 = vector.shape_cast %53 : vector<1x8x128xf32> to vector<8x128xf32>
    %55 = vector.shape_cast %52 : vector<8x128xf32> to vector<1x8x128xf32>
    tpu.vector_store %arg6[%c0_23, %c0_24, %c0_25], %55 {strides = array<i32>} : memref<1x8x128xf32, #tpu.memory_space<vmem>>, vector<1x8x128xf32>,
    %cst_26 = arith.constant dense<0xFF800000> : vector<128xf32>
    %56 = vector.multi_reduction <maximumf>, %52, %cst_26 [0] : vector<8x128xf32> to vector<128xf32>
    %57 = vector.shape_cast %56 : vector<128xf32> to vector<1x128xf32>
    %58 = vector.broadcast %57 : vector<1x128xf32> to vector<8x128xf32>
    %59 = arith.cmpf oeq, %52, %58 : vector<8x128xf32>
    %60 = tpu.iota {dimensions = array<i32: 0>} : vector<8x128xi32>
    %c12_i32 = arith.constant 12 : i32
    %61 = vector.broadcast %c12_i32 : i32 to vector<8x128xi32>
    %62 = arith.shli %60, %61 : vector<8x128xi32>
    %c0_27 = arith.constant 0 : index
    %c0_28 = arith.constant 0 : index
    %c0_29 = arith.constant 0 : index
    %63 = vector.load %arg4[%c0_27, %c0_28, %c0_29] : memref<1x8x1xi32, #tpu.memory_space<vmem>>, vector<1x8x1xi32>
    %64 = vector.shape_cast %63 : vector<1x8x1xi32> to vector<8x1xi32>
    %65 = vector.broadcast %64 : vector<8x1xi32> to vector<8x128xi32>
    %66 = arith.addi %62, %65 : vector<8x128xi32>
    %c32768_i32 = arith.constant 32768 : i32
    %67 = vector.broadcast %c32768_i32 : i32 to vector<8x128xi32>
    %68 = arith.select %59, %66, %67 : vector<8x128xi1>, vector<8x128xi32>
    %cst_30 = arith.constant dense<2147483647> : vector<128xi32>
    %69 = vector.multi_reduction <minsi>, %68, %cst_30 [0] : vector<8x128xi32> to vector<128xi32>
    %70 = vector.shape_cast %69 : vector<128xi32> to vector<1x128xi32>
    %c12_i32_31 = arith.constant 12 : i32
    %71 = vector.broadcast %c12_i32_31 : i32 to vector<1x128xi32>
    %72 = arith.shrsi %70, %71 : vector<1x128xi32>
    %c4095_i32 = arith.constant 4095 : i32
    %73 = vector.broadcast %c4095_i32 : i32 to vector<1x128xi32>
    %74 = arith.andi %70, %73 : vector<1x128xi32>
    %cst_32 = arith.constant 0.000000e+00 : f32
    %75 = vector.broadcast %cst_32 : f32 to vector<8x128xf32>
    %76 = arith.cmpf ogt, %40, %75 : vector<8x128xf32>
    %cst_33 = arith.constant 5.000000e-01 : f32
    %77 = vector.broadcast %cst_33 : f32 to vector<8x128xf32>
    %78 = arith.mulf %77, %44 : vector<8x128xf32>
    %79 = arith.cmpf oge, %40, %78 : vector<8x128xf32>
    %80 = arith.andi %76, %79 : vector<8x128xi1>
    %81 = arith.extui %80 : vector<8x128xi1> to vector<8x128xi32>
    %cst_34 = arith.constant dense<-2147483648> : vector<128xi32>
    %82 = vector.multi_reduction <maxsi>, %81, %cst_34 [0] : vector<8x128xi32> to vector<128xi32>
    %83 = vector.shape_cast %82 : vector<128xi32> to vector<1x128xi32>
    %c0_i32 = arith.constant 0 : i32
    %84 = vector.broadcast %c0_i32 : i32 to vector<1x128xi32>
    %85 = arith.cmpi eq, %83, %84 : vector<1x128xi32>
    %c20_i32 = arith.constant 20 : i32
    %86 = vector.broadcast %c20_i32 : i32 to vector<1x128xi32>
    %87 = arith.select %85, %86, %74 : vector<1x128xi1>, vector<1x128xi32>
    %c13_i32 = arith.constant 13 : i32
    %88 = vector.broadcast %c13_i32 : i32 to vector<1x128xi32>
    %89 = arith.shli %72, %88 : vector<1x128xi32>
    %c12_i32_35 = arith.constant 12 : i32
    %90 = vector.broadcast %c12_i32_35 : i32 to vector<1x128xi32>
    %91 = arith.shli %83, %90 : vector<1x128xi32>
    %92 = arith.ori %89, %91 : vector<1x128xi32>
    %93 = arith.ori %92, %87 : vector<1x128xi32>
    %c0_36 = arith.constant 0 : index
    %c0_37 = arith.constant 0 : index
    %c0_38 = arith.constant 0 : index
    %94 = vector.load %arg5[%c0_36, %c0_37, %c0_38] : memref<1x1x128xi32, #tpu.memory_space<vmem>>, vector<1x1x128xi32>
    %95 = vector.shape_cast %94 : vector<1x1x128xi32> to vector<1x128xi32>
    %96 = vector.shape_cast %93 : vector<1x128xi32> to vector<1x1x128xi32>
    tpu.vector_store %arg5[%c0_36, %c0_37, %c0_38], %96 {strides = array<i32>} : memref<1x1x128xi32, #tpu.memory_space<vmem>>, vector<1x1x128xi32>,
    return
  }
  func.func @transform_0(%arg0: i32, %arg1: i32) -> (i32, i32, i32) {
    %c0_i32 = arith.constant 0 : i32
    %c0_i32_0 = arith.constant 0 : i32
    %c0_i32_1 = arith.constant 0 : i32
    return %arg0, %c0_i32, %c0_i32_0 : i32, i32, i32
  }
  func.func @transform_1(%arg0: i32, %arg1: i32) -> (i32, i32, i32) {
    %c0_i32 = arith.constant 0 : i32
    %c0_i32_0 = arith.constant 0 : i32
    return %arg0, %c0_i32, %arg1 : i32, i32, i32
  }
  func.func @transform_2(%arg0: i32, %arg1: i32) -> (i32, i32, i32) {
    %c0_i32 = arith.constant 0 : i32
    %c0_i32_0 = arith.constant 0 : i32
    %c0_i32_1 = arith.constant 0 : i32
    return %arg0, %c0_i32, %c0_i32_0 : i32, i32, i32
  }
  func.func @transform_3(%arg0: i32, %arg1: i32) -> (i32, i32, i32) {
    %c0_i32 = arith.constant 0 : i32
    %c0_i32_0 = arith.constant 0 : i32
    return %arg0, %c0_i32, %arg1 : i32, i32, i32
  }
  func.func @transform_4(%arg0: i32, %arg1: i32) -> (i32, i32, i32) {
    %c0_i32 = arith.constant 0 : i32
    %c0_i32_0 = arith.constant 0 : i32
    return %arg0, %c0_i32, %arg1 : i32, i32, i32
  }
}

</mosaic_0001>

<llo_original>
// kernel: tpu_custom_call.1
$region0: #{tpu_custom_call.1}
  #allocation0 [shape = 'u32[]', space=smem, size = 0x4, offset = 0x4, fixed_abs, tag = 'smem constant byte address 0x4 - core index']
  #allocation1 [shape = 'u32[144,128]{1,0:T(1,128)}', space=vmem, size = 0x12000, scoped, tag = 'internal scratch']
  %s0 = inlined_call_operand.vmem [shape: f32[2,8,4], index: 0, kind: input, shape index: {}]
  %s1 = inlined_call_operand.vmem [shape: f32[2,4,128], index: 1, kind: input, shape index: {}]
  %s2 = inlined_call_operand.vmem [shape: s32[2,8,1], index: 2, kind: input, shape index: {}]
  %s3 = inlined_call_operand.hbm [shape: s32[2,1,128], index: 3, kind: output, shape index: {0}]
  %s4 = inlined_call_operand.hbm [shape: f32[2,8,128], index: 4, kind: output, shape index: {1}]
  %5 = xla_tuple %s3, %s4
  %s6 = sld [smem:[#allocation0]]
  $region53: #{tpu_custom_call.1} parent=0
    _
  %s8 = ssub.s32 1, %s6
  %s9 = scalar_select 0, %s8, %s6
  $region1: #{tpu_custom_call.1} parent=0
    #allocation2 [shape = 'u8[1024]{0}', space=vmem, size = 0x400, scoped, tag = 'output window, operand 0']
    #allocation3 [shape = 's32[2]{0}', space=sflag, size = 0x8, scoped, tag = 'scoped memory for tpu_custom_call.1']
    #allocation4 [shape = 'u8[8192]{0}', space=vmem, size = 0x2000, scoped, tag = 'output window, operand 1']
    #allocation5 [shape = 's32[2]{0}', space=sflag, size = 0x8, scoped, tag = 'scoped memory for tpu_custom_call.1']
    %10 = vsyncpa [#allocation3], 0
    %s11 = scalar_lea.sflag [#allocation3], 1
    %12 = vsyncpa %s11, 0
    %13 = vsyncpa [#allocation5], 0
    %s14 = scalar_lea.sflag [#allocation5], 1
    %15 = vsyncpa %s14, 0
    loop: start=0, step=1, limit=4
    $region2: #{tpu_custom_call.1} parent=1 // loop_pre_header
      _
    $region3: #{tpu_custom_call.1} parent=1 // loop_header
      %s17 = sphi 0, %s21
      %p18 = scmp.ge.s32.totalorder %s17, 4
      %s24 = sphi 0, %s36
      %s25 = sphi 0, %s32
      %s26 = sphi 0, %s24
      %s27 = sphi 0, %s25
      %s28 = sphi 0, %s26
      %s29 = sphi 0, %s27
      %s39 = sphi 0, %s41
      %s42 = sphi 0, %s39
      %s43 = sphi 0, %s42
      %s59 = sphi 0, %s43
      %s67 = sphi 0, %s69
      %s70 = sphi 0, %s67
      %s71 = sphi 0, %s70
      %s87 = sphi 0, %s71
      %s93 = sphi 0, %s95
      %s96 = sphi 0, %s93
      %s97 = sphi 0, %s96
      %s113 = sphi 0, %s97
      %s121 = sphi 0, %s123
      %s124 = sphi 0, %s121
      %s125 = sphi 0, %s124
      %s141 = sphi 0, %s125
      %s149 = sphi 0, %s151
      %s152 = sphi 0, %s149
      %s153 = sphi 0, %s152
      %s169 = sphi 0, %s153
    $region4: #{tpu_custom_call.1} parent=1 // loop_header_branch
      %20 = sbr.rel (%p18) target = $region8
    $region5: #{tpu_custom_call.1} parent=1 // loop_body
      %s22 = ssub.s32 %s17, 1
      %s23 = ssub.s32 %s17, 2
      %s30 = sadd.s32 1, %s25
      %p31 = scmp.ge.s32.totalorder %s30, 1
      %s32 = scalar_select %p31, 0, %s30
      %s33 = sadd.s32 1, %s24
      %s34 = scalar_select %p31, %s33, %s24
      %p35 = scmp.ge.s32.totalorder %s34, 2
      %s36 = scalar_select %p35, 0, %s34
      %s37 = ssub.s32 %s24, %s36
      %p38 = scmp.eq.s32.totalorder %s37, 0
      %s40 = sadd.s32 %s39, 1
      %s41 = scalar_select %p38, %s39, %s40
      %p44 = pneg %p38
      %p45 = scmp.eq.s32.totalorder %s17, 1
      %p46 = por %p44, %p45
      %p47 = scmp.ne.s32.totalorder %s39, %s42
      %p48 = scmp.eq.s32.totalorder %s17, 0
      %p49 = por %p47, %p48
      %p50 = scmp.ne.s32.totalorder %s39, %s42
      %p51 = scmp.eq.s32.totalorder %s22, 1
      %p52 = por %p50, %p51
      %p53 = scmp.ne.s32.totalorder %s42, %s43
      %p54 = scmp.eq.s32.totalorder %s22, 0
      %p55 = por %p53, %p54
      %p56 = scmp.ne.s32.totalorder %s42, %s43
      %p57 = scmp.eq.s32.totalorder %s23, 1
      %p58 = por %p56, %p57
      %p60 = scmp.ne.s32.totalorder %s43, %s59
      %p61 = scmp.eq.s32.totalorder %s23, 0
      %p62 = por %p60, %p61
      %s63 = ssub.s32 %s24, %s36
      %s64 = ssub.s32 %s25, %s32
      %s65 = sor.u32 %s63, %s64
      %p66 = scmp.eq.s32.totalorder %s65, 0
      %s68 = sadd.s32 %s67, 1
      %s69 = scalar_select %p66, %s67, %s68
      %p72 = pneg %p66
      %p73 = scmp.eq.s32.totalorder %s17, 1
      %p74 = por %p72, %p73
      %p75 = scmp.ne.s32.totalorder %s67, %s70
      %p76 = scmp.eq.s32.totalorder %s17, 0
      %p77 = por %p75, %p76
      %p78 = scmp.ne.s32.totalorder %s67, %s70
      %p79 = scmp.eq.s32.totalorder %s22, 1
      %p80 = por %p78, %p79
      %p81 = scmp.ne.s32.totalorder %s70, %s71
      %p82 = scmp.eq.s32.totalorder %s22, 0
      %p83 = por %p81, %p82
      %p84 = scmp.ne.s32.totalorder %s70, %s71
      %p85 = scmp.eq.s32.totalorder %s23, 1
      %p86 = por %p84, %p85
      %p88 = scmp.ne.s32.totalorder %s71, %s87
      %p89 = scmp.eq.s32.totalorder %s23, 0
      %p90 = por %p88, %p89
      %s91 = ssub.s32 %s24, %s36
      %p92 = scmp.eq.s32.totalorder %s91, 0
      %s94 = sadd.s32 %s93, 1
      %s95 = scalar_select %p92, %s93, %s94
      %p98 = pneg %p92
      %p99 = scmp.eq.s32.totalorder %s17, 1
      %p100 = por %p98, %p99
      %p101 = scmp.ne.s32.totalorder %s93, %s96
      %p102 = scmp.eq.s32.totalorder %s17, 0
      %p103 = por %p101, %p102
      %p104 = scmp.ne.s32.totalorder %s93, %s96
      %p105 = scmp.eq.s32.totalorder %s22, 1
      %p106 = por %p104, %p105
      %p107 = scmp.ne.s32.totalorder %s96, %s97
      %p108 = scmp.eq.s32.totalorder %s22, 0
      %p109 = por %p107, %p108
      %p110 = scmp.ne.s32.totalorder %s96, %s97
      %p111 = scmp.eq.s32.totalorder %s23, 1
      %p112 = por %p110, %p111
      %p114 = scmp.ne.s32.totalorder %s97, %s113
      %p115 = scmp.eq.s32.totalorder %s23, 0
      %p116 = por %p114, %p115
      %s117 = ssub.s32 %s24, %s36
      %s118 = ssub.s32 %s25, %s32
      %s119 = sor.u32 %s117, %s118
      %p120 = scmp.eq.s32.totalorder %s119, 0
      %s122 = sadd.s32 %s121, 1
      %s123 = scalar_select %p120, %s121, %s122
      %p126 = pneg %p120
      %p127 = scmp.eq.s32.totalorder %s17, 1
      %p128 = por %p126, %p127
      %p129 = scmp.ne.s32.totalorder %s121, %s124
      %p130 = scmp.eq.s32.totalorder %s17, 0
      %p131 = por %p129, %p130
      %p132 = scmp.ne.s32.totalorder %s121, %s124
      %p133 = scmp.eq.s32.totalorder %s22, 1
      %p134 = por %p132, %p133
      %p135 = scmp.ne.s32.totalorder %s124, %s125
      %p136 = scmp.eq.s32.totalorder %s22, 0
      %p137 = por %p135, %p136
      %p138 = scmp.ne.s32.totalorder %s124, %s125
      %p139 = scmp.eq.s32.totalorder %s23, 1
      %p140 = por %p138, %p139
      %p142 = scmp.ne.s32.totalorder %s125, %s141
      %p143 = scmp.eq.s32.totalorder %s23, 0
      %p144 = por %p142, %p143
      %s145 = ssub.s32 %s24, %s36
      %s146 = ssub.s32 %s25, %s32
      %s147 = sor.u32 %s145, %s146
      %p148 = scmp.eq.s32.totalorder %s147, 0
      %s150 = sadd.s32 %s149, 1
      %s151 = scalar_select %p148, %s149, %s150
      %p154 = pneg %p148
      %p155 = scmp.eq.s32.totalorder %s17, 1
      %p156 = por %p154, %p155
      %p157 = scmp.ne.s32.totalorder %s149, %s152
      %p158 = scmp.eq.s32.totalorder %s17, 0
      %p159 = por %p157, %p158
      %p160 = scmp.ne.s32.totalorder %s149, %s152
      %p161 = scmp.eq.s32.totalorder %s22, 1
      %p162 = por %p160, %p161
      %p163 = scmp.ne.s32.totalorder %s152, %s153
      %p164 = scmp.eq.s32.totalorder %s22, 0
      %p165 = por %p163, %p164
      %p166 = scmp.ne.s32.totalorder %s152, %s153
      %p167 = scmp.eq.s32.totalorder %s23, 1
      %p168 = por %p166, %p167
      %p170 = scmp.ne.s32.totalorder %s153, %s169
      %p171 = scmp.eq.s32.totalorder %s23, 0
      %p172 = por %p170, %p171
      %p173 = scmp.le.s32.totalorder 1, %s17
      %p174 = scmp.lt.s32.totalorder %s17, 3
      %p175 = pnand %p173, %p174
      %p176 = pneg %p175
      // Predicated region
      $region9: #{tpu_custom_call.1} parent=5 // pred_check
        _
      $region10: #{tpu_custom_call.1} parent=5 // pred_check_branch
        %178 = sbr.rel (%p175) target = $region12
      $region11: #{tpu_custom_call.1} parent=5 // pred_region
        %s179 = ssub.s32 %s17, 1
      $region12: #{tpu_custom_call.1} parent=5 // pred_fallthru
        _
      %p180 = scmp.lt.s32.totalorder %s17, 2
      // Predicated region
      $region13: #{tpu_custom_call.1} parent=5 // pred_check
        %p181 = pneg %p180
      $region14: #{tpu_custom_call.1} parent=5 // pred_check_branch
        %183 = sbr.rel (%p181) target = $region16
      $region15: #{tpu_custom_call.1} parent=5 // pred_region
        // Predicated region
        $region17: #{tpu_custom_call.1} parent=15 // pred_check
          %p184 = pneg %p49
        $region18: #{tpu_custom_call.1} parent=15 // pred_check_branch
          %186 = sbr.rel (%p184) target = $region20
        $region19: #{tpu_custom_call.1} parent=15 // pred_region
          %p187 = scmp.lt.s32.totalorder %s24, 1
          %s188 = scalar_select %p187, %s24, 1
          %s189 = smul.addr %s188, 8
          %s190 = scalar_lea.vmem %s0, %s189
        $region20: #{tpu_custom_call.1} parent=15 // pred_fallthru
          _
        // Predicated region
        $region21: #{tpu_custom_call.1} parent=15 // pred_check
          %p191 = pneg %p77
        $region22: #{tpu_custom_call.1} parent=15 // pred_check_branch
          %193 = sbr.rel (%p191) target = $region24
        $region23: #{tpu_custom_call.1} parent=15 // pred_region
          %p194 = scmp.lt.s32.totalorder %s24, 1
          %s195 = scalar_select %p194, %s24, 1
          %p196 = scmp.lt.s32.totalorder %s25, 0
          %s197 = scalar_select %p196, %s25, 0
          %s198 = sadd.s32 %s197, %s195
          %s199 = smul.addr %s198, 4
          %s200 = scalar_lea.vmem %s1, %s199
        $region24: #{tpu_custom_call.1} parent=15 // pred_fallthru
          _
        // Predicated region
        $region25: #{tpu_custom_call.1} parent=15 // pred_check
          %p201 = pneg %p103
        $region26: #{tpu_custom_call.1} parent=15 // pred_check_branch
          %203 = sbr.rel (%p201) target = $region28
        $region27: #{tpu_custom_call.1} parent=15 // pred_region
          %p204 = scmp.lt.s32.totalorder %s24, 1
          %s205 = scalar_select %p204, %s24, 1
          %s206 = smul.addr %s205, 8
          %s207 = scalar_lea.vmem %s2, %s206
        $region28: #{tpu_custom_call.1} parent=15 // pred_fallthru
          _
      $region16: #{tpu_custom_call.1} parent=5 // pred_fallthru
        _
      %p208 = scmp.le.s32.totalorder 1, %s17
      %p209 = scmp.lt.s32.totalorder %s17, 3
      %p210 = pnand %p208, %p209
      %p211 = pneg %p210
      // Predicated region
      $region29: #{tpu_custom_call.1} parent=5 // pred_check
        _
      $region30: #{tpu_custom_call.1} parent=5 // pred_check_branch
        %213 = sbr.rel (%p210) target = $region32
      $region31: #{tpu_custom_call.1} parent=5 // pred_region
        %s214 = ssub.s32 %s17, 1
        %p215 = scmp.lt.s32.totalorder %s26, 1
        %s216 = scalar_select %p215, %s26, 1
        %s217 = smul.addr %s216, 8
        %s218 = scalar_lea.vmem %s0, %s217
        %p219 = pneg %p55
        %p220 = pneg %p52
        %p221 = scmp.lt.s32.totalorder %s26, 1
        %s222 = scalar_select %p221, %s26, 1
        %p223 = scmp.lt.s32.totalorder %s27, 0
        %s224 = scalar_select %p223, %s27, 0
        %s225 = sadd.s32 %s224, %s222
        %s226 = smul.addr %s225, 4
        %s227 = scalar_lea.vmem %s1, %s226
        %p228 = pneg %p83
        %p229 = pneg %p80
        %p230 = scmp.lt.s32.totalorder %s26, 1
        %s231 = scalar_select %p230, %s26, 1
        %s232 = smul.addr %s231, 8
        %s233 = scalar_lea.vmem %s2, %s232
        %p234 = pneg %p109
        %p235 = pneg %p106
        %p236 = pneg %p137
        %p237 = pneg %p134
        %s238 = sand.u32 %s124, 1
        %s239 = scalar_lea.sflag [#allocation3], %s238
        %s240 = sand.u32 %s124, 1
        %s241 = scalar_lea.vmem [#allocation2], %s240
        %p242 = pneg %p165
        %p243 = pneg %p162
        %s244 = sand.u32 %s152, 1
        %s245 = scalar_lea.sflag [#allocation5], %s244
        %s246 = sand.u32 %s152, 1
        %s247 = smul.addr %s246, 8
        %s248 = scalar_lea.vmem [#allocation4], %s247
        %p249 = scmp.lt.s32.totalorder %s26, 1
        %s250 = scalar_select %p249, %s26, 1
        %s251 = smul.addr %s250, 8
        %s252 = scalar_lea.vmem %s0, %s251
        %p253 = scmp.lt.s32.totalorder %s26, 1
        %s254 = scalar_select %p253, %s26, 1
        %p255 = scmp.lt.s32.totalorder %s27, 0
        %s256 = scalar_select %p255, %s27, 0
        %s257 = sadd.s32 %s256, %s254
        %s258 = smul.addr %s257, 4
        %s259 = scalar_lea.vmem %s1, %s258
        %p260 = scmp.lt.s32.totalorder %s26, 1
        %s261 = scalar_select %p260, %s26, 1
        %s262 = smul.addr %s261, 8
        %s263 = scalar_lea.vmem %s2, %s262
        %v264 = vld [vmem:[%s252] sm:$0xff]
        %v265 = vld [vmem:[%s259] sm:$0x1]
        %v266 = vld [vmem:[%s259 + $0x1] sm:$0x1]
        %v267 = vld [vmem:[%s259 + $0x2] sm:$0x1]
        %v268 = vld [vmem:[%s259 + $0x3] sm:$0x1]
        %270 = vrot.lane.b32.xlu0 %v264, 2
        %v271 = vpop.permute.xlu0 %270
        %v273 = vsub.f32 %v264, %v271
        %275 = vrot.lane.b32.xlu0 %v273, 127
        %v276 = vpop.permute.xlu0 %275
        %v278 = vmul.f32 %v273, %v276
        %v279 = vsub.f32 %v267, %v265
        %v280 = vsub.f32 %v268, %v266
        %v281 = vmul.f32 %v279, %v280
        %282 = vset.pattern.permute.xlu0 2
        %283 = vperm.xlu0 %282, %v264
        %v284 = vpop.permute.xlu0 %283
        %v286 = vlaneseq
        %v287 = vshrl.u32 %v286, 7
        %v288 = vsub.s32 0, %v287
        %v289 = vrot.slane %v267, %v288
        %v290 = vmin.f32 %v284, %v289
        %291 = vset.pattern.permute.xlu0 0
        %292 = vperm.xlu0 %291, %v264
        %v293 = vpop.permute.xlu0 %292
        %v295 = vlaneseq
        %v296 = vshrl.u32 %v295, 7
        %v297 = vsub.s32 0, %v296
        %v298 = vrot.slane %v265, %v297
        %v299 = vmax.f32 %v293, %v298
        %v300 = vsub.f32 %v290, %v299
        %v301 = vmax.f32 %v300, 0.0
        %302 = vset.pattern.permute.xlu0 3
        %303 = vperm.xlu0 %302, %v264
        %v304 = vpop.permute.xlu0 %303
        %v306 = vlaneseq
        %v307 = vshrl.u32 %v306, 7
        %v308 = vsub.s32 0, %v307
        %v309 = vrot.slane %v268, %v308
        %v310 = vmin.f32 %v304, %v309
        %311 = vset.pattern.permute.xlu0 1
        %312 = vperm.xlu0 %311, %v264
        %v313 = vpop.permute.xlu0 %312
        %v315 = vlaneseq
        %v316 = vshrl.u32 %v315, 7
        %v317 = vsub.s32 0, %v316
        %v318 = vrot.slane %v266, %v317
        %v319 = vmax.f32 %v313, %v318
        %v320 = vsub.f32 %v310, %v319
        %v321 = vmax.f32 %v320, 0.0
        %v322 = vmul.f32 %v301, %v321
        %324 = vset.pattern.permute.xlu0 2
        %325 = vperm.xlu0 %324, %v278
        %v326 = vpop.permute.xlu0 %325
        %v328 = vlaneseq
        %v329 = vshrl.u32 %v328, 7
        %v330 = vsub.s32 0, %v329
        %v331 = vrot.slane %v281, %v330
        %v332 = vadd.f32 %v326, %v331
        %v333 = vsub.f32 %v332, %v322
        %v334 = vmax.f32 %v333, 1e-12
        %v335 = vrcp.pop %v334
        %v336 = vmul.f32 %v334, %v335
        %v337 = vsub.f32 2.0, %v336
        %v338 = vmul.f32 %v335, %v337
        %v339 = vmul.f32 %v322, %v338
        %340 = vst [vmem:[%s248] sm:$0xff] %v339
        %v341 = vrot.slane %v339, 4
        %v342 = vmax.f32 %v339, %v341
        %v343 = vrot.slane %v342, 2
        %v344 = vmax.f32 %v342, %v343
        %v345 = vrot.slane %v344, 1
        %v346 = vmax.f32 %v344, %v345
        %vm347 = vcmp.eq.f32.partialorder %v339, %v346
        %v348 = vlaneseq
        %v349 = vshrl.u32 %v348, 7
        %v350 = vshll.u32 %v349, 12
        %v351 = vld [vmem:[%s263] sm:$0xff]
        %352 = vset.pattern.permute.xlu0 0
        %353 = vperm.xlu0 %352, %v351
        %v354 = vpop.permute.xlu0 %353
        %v355 = vadd.s32 %v350, %v354
        %v356 = vsel %vm347, %v355, 32768
        %v357 = vrot.slane %v356, 4
        %vm358 = vcmp.lt.s32.totalorder %v356, %v357
        %v359 = vsel %vm358, %v356, %v357
        %v360 = vrot.slane %v359, 2
        %vm361 = vcmp.lt.s32.totalorder %v359, %v360
        %v362 = vsel %vm361, %v359, %v360
        %v363 = vrot.slane %v362, 1
        %vm364 = vcmp.lt.s32.totalorder %v362, %v363
        %v365 = vsel %vm364, %v362, %v363
        %v366 = vshra.s32 %v365, 12
        %v367 = vand.u32 %v365, 4095
        %vm368 = vcmp.gt.f32.partialorder %v322, 0.0
        %v369 = vmul.f32 %v333, 0.5
        %vm370 = vcmp.ge.f32.partialorder %v322, %v369
        %vm371 = vmand %vm368, %vm370
        %v372 = vsel %vm371, 1, 0
        %v373 = vrot.slane %v372, 4
        %vm374 = vcmp.gt.s32.totalorder %v372, %v373
        %v375 = vsel %vm374, %v372, %v373
        %v376 = vrot.slane %v375, 2
        %vm377 = vcmp.gt.s32.totalorder %v375, %v376
        %v378 = vsel %vm377, %v375, %v376
        %v379 = vrot.slane %v378, 1
        %vm380 = vcmp.gt.s32.totalorder %v378, %v379
        %v381 = vsel %vm380, %v378, %v379
        %vm382 = vcmp.eq.s32.totalorder %v381, 0
        %v383 = vsel %vm382, 20, %v367
        %v384 = vshll.u32 %v366, 13
        %v385 = vshll.u32 %v381, 12
        %v386 = vor.u32 %v384, %v385
        %v387 = vor.u32 %v386, %v383
        %388 = vst [vmem:[%s241] sm:$0x1] %v387
        %s389 = sand.u32 %s124, 1
        %s390 = scalar_lea.sflag [#allocation3], %s389
        %s391 = sand.u32 %s124, 1
        %s392 = scalar_lea.vmem [#allocation2], %s391
        %s393 = sand.u32 %s152, 1
        %s394 = scalar_lea.sflag [#allocation5], %s393
        %s395 = sand.u32 %s152, 1
        %s396 = smul.addr %s395, 8
        %s397 = scalar_lea.vmem [#allocation4], %s396
        // Predicated region
        $region33: #{tpu_custom_call.1} parent=31 // pred_check
          %p398 = pneg %p134
        $region34: #{tpu_custom_call.1} parent=31 // pred_check_branch
          %400 = sbr.rel (%p398) target = $region36
        $region35: #{tpu_custom_call.1} parent=31 // pred_region
          %s402 = ssub.s32 16, 16
          %403 = vsyncadd %s390, %s402
          %s404 = sadd.s32 %s27, %s26
          %s405 = smul.addr %s404, 16
          %s406 = scalar_lea.hbm %s3, %s405
          %s408 = sshll.u32 %s392, 4
          %s409 = int_to_ptr.vmem [resolvable:$true] %s408
          %411 = dma.vmem_to_hbm [thread:$0]  %s409, 16, %s406, %s390
        $region36: #{tpu_custom_call.1} parent=31 // pred_fallthru
          _
        // Predicated region
        $region37: #{tpu_custom_call.1} parent=31 // pred_check
          %p412 = pneg %p162
        $region38: #{tpu_custom_call.1} parent=31 // pred_check_branch
          %414 = sbr.rel (%p412) target = $region40
        $region39: #{tpu_custom_call.1} parent=31 // pred_region
          %s416 = ssub.s32 128, 128
          %417 = vsyncadd %s394, %s416
          %s418 = sadd.s32 %s27, %s26
          %s419 = smul.addr %s418, 128
          %s420 = scalar_lea.hbm %s4, %s419
          %s422 = sshll.u32 %s397, 4
          %s423 = int_to_ptr.vmem [resolvable:$true] %s422
          %425 = dma.vmem_to_hbm [thread:$0]  %s423, 128, %s420, %s394
        $region40: #{tpu_custom_call.1} parent=31 // pred_fallthru
          _
      $region32: #{tpu_custom_call.1} parent=5 // pred_fallthru
        _
      %p426 = scmp.le.s32.totalorder 2, %s17
      // Predicated region
      $region41: #{tpu_custom_call.1} parent=5 // pred_check
        %p427 = pneg %p426
      $region42: #{tpu_custom_call.1} parent=5 // pred_check_branch
        %429 = sbr.rel (%p427) target = $region44
      $region43: #{tpu_custom_call.1} parent=5 // pred_region
        %s430 = ssub.s32 %s17, 2
        // Predicated region
        $region45: #{tpu_custom_call.1} parent=43 // pred_check
          %p431 = pneg %p140
        $region46: #{tpu_custom_call.1} parent=43 // pred_check_branch
          %433 = sbr.rel (%p431) target = $region48
        $region47: #{tpu_custom_call.1} parent=43 // pred_region
          %s434 = sand.u32 %s125, 1
          %s435 = scalar_lea.sflag [#allocation3], %s434
          %s436 = sand.u32 %s125, 1
          %s437 = scalar_lea.vmem [#allocation2], %s436
          %438 = dma.done %s435, 16
        $region48: #{tpu_custom_call.1} parent=43 // pred_fallthru
          _
        // Predicated region
        $region49: #{tpu_custom_call.1} parent=43 // pred_check
          %p439 = pneg %p168
        $region50: #{tpu_custom_call.1} parent=43 // pred_check_branch
          %441 = sbr.rel (%p439) target = $region52
        $region51: #{tpu_custom_call.1} parent=43 // pred_region
          %s442 = sand.u32 %s153, 1
          %s443 = scalar_lea.sflag [#allocation5], %s442
          %s444 = sand.u32 %s153, 1
          %s445 = smul.addr %s444, 8
          %s446 = scalar_lea.vmem [#allocation4], %s445
          %447 = dma.done %s443, 128
        $region52: #{tpu_custom_call.1} parent=43 // pred_fallthru
          _
      $region44: #{tpu_custom_call.1} parent=5 // pred_fallthru
        _
    $region6: #{tpu_custom_call.1} parent=1 // loop_footer
      %s21 = sadd.s32 1, %s17
    $region7: #{tpu_custom_call.1} parent=1 // loop_footer_branch
      %16 = sbr.rel target = $region3
    $region8: #{tpu_custom_call.1} parent=1 // loop_exit
      _
    %448 = vsyncpa [#allocation3], 1
    %s449 = scalar_lea.sflag [#allocation3], 1
    %450 = vsyncpa %s449, 1
    %451 = vsyncpa [#allocation5], 1
    %s452 = scalar_lea.sflag [#allocation5], 1
    %453 = vsyncpa %s452, 1

</llo_original>
